<compile_context>
chip_gen: v7x
topology: tpu7x:2x2x1
jax: 0.10.0
libtpu: 0.0.40
codegen_flags: <defaults>
</compile_context>

<pallas_src>
import functools

import jax
import jax.numpy as jnp
from jax.experimental import pallas as pl
from jax.experimental.pallas import tpu as pltpu

NEG_SLOPE = 0.01          # F.leaky_relu default negative_slope
HIDDEN = 128              # fc1/fc2 width in the PyTorch module
HEAD_PAD = 128            # lane-dense padded head width (>= action_dim + 1)
FUSED_BATCH_MAX = 4096    # single-block fully fused path up to this batch
BATCH_TILE = 2048         # batch tile for the large-batch grid path


def _leaky_relu(x):
    # max(x, slope*x) == leaky_relu(x) exactly for 0 < slope < 1.
    return jnp.maximum(x, NEG_SLOPE * x)


# --------------------------------------------------------------------------
# Fused kernel (grid-less): whole forward + scalar mean + combine in VMEM.
# --------------------------------------------------------------------------
def dueling_fused_kernel(x_ref, w1_ref, b1_ref, w2_ref, b2_ref,
                         wh_ref, bh_ref, out_ref, *, action_dim):
    x = x_ref[...].astype(jnp.bfloat16)                       # cast in-kernel
    h = jnp.dot(x, w1_ref[...], preferred_element_type=jnp.float32)
    h = _leaky_relu(h + b1_ref[...])                           # (B, 128)

    h = jnp.dot(h.astype(jnp.bfloat16), w2_ref[...],
                preferred_element_type=jnp.float32)
    h = _leaky_relu(h + b2_ref[...])                           # (B, 128)

    # Lane-dense fused head: columns [0:A)=adv, [A]=val, rest zero-padded.
    head = jnp.dot(h.astype(jnp.bfloat16), wh_ref[...],
                   preferred_element_type=jnp.float32) + bh_ref[...]

    adv = head[:, :action_dim]
    val = head[:, action_dim:action_dim + 1]
    out_ref[...] = val + adv - jnp.mean(adv)   # scalar mean over batch+actions


# --------------------------------------------------------------------------
# Large-batch kernel: heads only (lane-dense (tb, 128) output slab).
# Combine happens as a fused jnp epilogue in the wrapper (scalar mean couples
# all batch rows, so it cannot live inside a batch-parallel grid step).
# --------------------------------------------------------------------------
def dueling_heads_kernel(x_ref, w1_ref, b1_ref, w2_ref, b2_ref,
                         wh_ref, bh_ref, head_ref):
    x = x_ref[...].astype(jnp.bfloat16)
    h = jnp.dot(x, w1_ref[...], preferred_element_type=jnp.float32)
    h = _leaky_relu(h + b1_ref[...])

    h = jnp.dot(h.astype(jnp.bfloat16), w2_ref[...],
                preferred_element_type=jnp.float32)
    h = _leaky_relu(h + b2_ref[...])

    head_ref[...] = jnp.dot(h.astype(jnp.bfloat16), wh_ref[...],
                            preferred_element_type=jnp.float32) + bh_ref[...]


# --------------------------------------------------------------------------
# One-time parameter prep (hoisted out of the per-call forward):
#   * weights -> bf16, biases -> f32
#   * [wa | wv] fused and zero-padded to a lane-dense (128, 128) head slab.
# --------------------------------------------------------------------------
def prepare_params(params):
    w1, b1, w2, b2, wa, ba, wv, bv = params
    action_dim = wa.shape[1]
    assert action_dim + 1 <= HEAD_PAD, "action_dim too large for HEAD_PAD"
    pad = HEAD_PAD - (action_dim + 1)

    wh = jnp.concatenate(
        [wa, wv, jnp.zeros((HIDDEN, pad), jnp.float32)], axis=1)
    bh = jnp.concatenate(
        [ba, bv, jnp.zeros((1, pad), jnp.float32)], axis=1)

    prepared = (w1.astype(jnp.bfloat16), b1.astype(jnp.float32),
                w2.astype(jnp.bfloat16), b2.astype(jnp.float32),
                wh.astype(jnp.bfloat16), bh.astype(jnp.float32))
    return prepared, action_dim


def _bytes_accessed(x, w1, b1, w2, b2, wh, bh, out_rows, out_cols):
    return (x.size * 4 + (w1.size + w2.size + wh.size) * 2
            + (b1.size + b2.size + bh.size) * 4 + out_rows * out_cols * 4)


@functools.partial(jax.jit, static_argnames=("action_dim",))
def dueling_dqn_forward(x, prepared, *, action_dim):
    w1, b1, w2, b2, wh, bh = prepared
    batch, state_dim = x.shape
    weights = (w1, b1, w2, b2, wh, bh)
    vmem = pl.BlockSpec(memory_space=pltpu.MemorySpace.VMEM)

    flops = 2 * batch * (state_dim * HIDDEN + HIDDEN * HIDDEN
                         + HIDDEN * HEAD_PAD)

    if batch <= FUSED_BATCH_MAX:
        # --- Fully fused, single launch, everything stays in VMEM. ---
        kernel = functools.partial(dueling_fused_kernel, action_dim=action_dim)
        return pl.pallas_call(
            kernel,
            out_shape=jax.ShapeDtypeStruct((batch, action_dim), jnp.float32),
            in_specs=[vmem] * 7,
            out_specs=vmem,
            cost_estimate=pl.CostEstimate(
                flops=flops, transcendentals=0,
                bytes_accessed=_bytes_accessed(x, *weights,
                                               batch, action_dim)),
        )(x, *weights)

    # --- Large-batch path: batch-parallel grid, lane-dense head output. ---
    tb = BATCH_TILE
    padded = pl.cdiv(batch, tb) * tb
    if padded != batch:
        x = jnp.pad(x, ((0, padded - batch), (0, 0)))
    grid = (padded // tb,)

    const = lambda i: (0, 0)   # weights/biases pinned in VMEM across blocks
    in_specs = [
        pl.BlockSpec((tb, state_dim), lambda i: (i, 0)),   # x streams
        pl.BlockSpec((state_dim, HIDDEN), const),          # w1
        pl.BlockSpec((1, HIDDEN), const),                  # b1
        pl.BlockSpec((HIDDEN, HIDDEN), const),             # w2
        pl.BlockSpec((1, HIDDEN), const),                  # b2
        pl.BlockSpec((HIDDEN, HEAD_PAD), const),           # fused head weight
        pl.BlockSpec((1, HEAD_PAD), const),                # fused head bias
    ]
    out_spec = pl.BlockSpec((tb, HEAD_PAD), lambda i: (i, 0))  # lane-dense

    # TODO(synk): on v7x, pltpu.CORE_PARALLEL on this axis would engage both
    # TensorCores; kept "parallel" here for portability across generations.
    head = pl.pallas_call(
        dueling_heads_kernel,
        out_shape=jax.ShapeDtypeStruct((padded, HEAD_PAD), jnp.float32),
        grid=grid,
        in_specs=in_specs,
        out_specs=out_spec,
        compiler_params=pltpu.CompilerParams(
            dimension_semantics=("parallel",)),
        cost_estimate=pl.CostEstimate(
            flops=flops, transcendentals=0,
            bytes_accessed=_bytes_accessed(x, *weights, padded, HEAD_PAD)),
    )(x, *weights)

    # Combine on the UNPADDED rows only (padding must not bias adv.mean()).
    head = head[:batch]
    adv = head[:, :action_dim]
    val = head[:, action_dim:action_dim + 1]
    return val + adv - jnp.mean(adv)   # trivial XLA-fused epilogue


# --------------------------------------------------------------------------
# Synthetic init + pure-JAX reference (mirrors the PyTorch forward).
# --------------------------------------------------------------------------
def init_params(key, state_dim, action_dim, hidden=HIDDEN):
    ks = jax.random.split(key, 8)

    def lin(kw, kb, fan_in, fan_out):
        bound = 1.0 / jnp.sqrt(fan_in)
        w = jax.random.uniform(kw, (fan_in, fan_out), jnp.float32, -bound, bound)
        b = jax.random.uniform(kb, (1, fan_out), jnp.float32, -bound, bound)
        return w, b

    w1, b1 = lin(ks[0], ks[1], state_dim, hidden)
    w2, b2 = lin(ks[2], ks[3], hidden, hidden)
    wa, ba = lin(ks[4], ks[5], hidden, action_dim)
    wv, bv = lin(ks[6], ks[7], hidden, 1)
    return (w1, b1, w2, b2, wa, ba, wv, bv)


def reference_forward(x, params, dtype=jnp.float32):
    """dtype=jnp.bfloat16 emulates the kernel's bf16-operand matmuls."""
    w1, b1, w2, b2, wa, ba, wv, bv = params

    def mm(a, w):
        return jnp.dot(a.astype(dtype), w.astype(dtype),
                       preferred_element_type=jnp.float32)

    h = _leaky_relu(mm(x, w1) + b1)
    h = _leaky_relu(mm(h, w2) + b2)
    adv = mm(h, wa) + ba
    val = mm(h, wv) + bv
    return val + adv - jnp.mean(adv)   # scalar mean, like torch adv.mean()


if __name__ == "__main__":
    state_dim, action_dim = 8, 4

    key = jax.random.PRNGKey(0)
    k_x, k_p, k_x2 = jax.random.split(key, 3)
    params = init_params(k_p, state_dim, action_dim)
    prepared, adim = prepare_params(params)          # one-time prep

    for batch, kx in ((2, k_x), (50, k_x2)):         # small + non-multiple-of-8
        x = jax.random.normal(kx, (batch, state_dim), dtype=jnp.float32)
        out = dueling_dqn_forward(x, prepared, action_dim=adim)
        out = jax.block_until_ready(out)
        assert out.shape == (batch, action_dim)

        # Tight check vs. precision-matched (bf16-operand) reference.
        ref_bf16 = reference_forward(x, params, dtype=jnp.bfloat16)
        assert jnp.allclose(out, ref_bf16, atol=2e-3, rtol=2e-3), \
            f"mismatch vs bf16 reference (batch={batch})"

        # Loose sanity check vs. full-f32 reference (bf16 rounding only).
        ref_f32 = reference_forward(x, params, dtype=jnp.float32)
        assert jnp.allclose(out, ref_f32, atol=5e-2, rtol=5e-2), \
            f"mismatch vs f32 reference (batch={batch})"

    print("KERNEL_OK")
</pallas_src>

<mosaic_0001>
module attributes {stable_mosaic.version = 11 : i64} {
  func.func @dueling_fused_kernel(%arg0: memref<2x8xf32, #tpu.memory_space<vmem>>, %arg1: memref<8x128xbf16, #tpu.memory_space<vmem>>, %arg2: memref<1x128xf32, #tpu.memory_space<vmem>>, %arg3: memref<128x128xbf16, #tpu.memory_space<vmem>>, %arg4: memref<1x128xf32, #tpu.memory_space<vmem>>, %arg5: memref<128x128xbf16, #tpu.memory_space<vmem>>, %arg6: memref<1x128xf32, #tpu.memory_space<vmem>>, %arg7: memref<2x4xf32, #tpu.memory_space<vmem>>) attributes {dimension_semantics = [], scalar_prefetch = 0 : i64, scratch_operands = 0 : i64, tpu.core_type = #tpu.core_type<tc>} {
    %c0 = arith.constant 0 : index
    %c0_0 = arith.constant 0 : index
    %0 = vector.load %arg0[%c0, %c0_0] : memref<2x8xf32, #tpu.memory_space<vmem>>, vector<2x8xf32>
    %1 = arith.truncf %0 : vector<2x8xf32> to vector<2x8xbf16>
    %c0_1 = arith.constant 0 : index
    %c0_2 = arith.constant 0 : index
    %2 = vector.load %arg1[%c0_1, %c0_2] : memref<8x128xbf16, #tpu.memory_space<vmem>>, vector<8x128xbf16>
    %cst = arith.constant dense<0.000000e+00> : vector<2x128xf32>
    %3 = tpu.matmul %1, %2, %cst {dimension_numbers = #tpu.dot_dimension_numbers<[1], [0], [0], [1], [0, 0, 1, 1], [], []>} : vector<2x8xbf16>, vector<8x128xbf16>, vector<2x128xf32> -> vector<2x128xf32>
    %c0_3 = arith.constant 0 : index
    %c0_4 = arith.constant 0 : index
    %4 = vector.load %arg2[%c0_3, %c0_4] : memref<1x128xf32, #tpu.memory_space<vmem>>, vector<1x128xf32>
    %5 = vector.broadcast %4 : vector<1x128xf32> to vector<2x128xf32>
    %6 = arith.addf %3, %5 : vector<2x128xf32>
    %cst_5 = arith.constant 0.00999999977 : f32
    %7 = vector.broadcast %cst_5 : f32 to vector<2x128xf32>
    %8 = arith.mulf %7, %6 : vector<2x128xf32>
    %9 = arith.maximumf %6, %8 : vector<2x128xf32>
    %10 = arith.truncf %9 : vector<2x128xf32> to vector<2x128xbf16>
    %c0_6 = arith.constant 0 : index
    %c0_7 = arith.constant 0 : index
    %11 = vector.load %arg3[%c0_6, %c0_7] : memref<128x128xbf16, #tpu.memory_space<vmem>>, vector<128x128xbf16>
    %cst_8 = arith.constant dense<0.000000e+00> : vector<2x128xf32>
    %12 = tpu.matmul %10, %11, %cst_8 {dimension_numbers = #tpu.dot_dimension_numbers<[1], [0], [0], [1], [0, 0, 1, 1], [], []>} : vector<2x128xbf16>, vector<128x128xbf16>, vector<2x128xf32> -> vector<2x128xf32>
    %c0_9 = arith.constant 0 : index
    %c0_10 = arith.constant 0 : index
    %13 = vector.load %arg4[%c0_9, %c0_10] : memref<1x128xf32, #tpu.memory_space<vmem>>, vector<1x128xf32>
    %14 = vector.broadcast %13 : vector<1x128xf32> to vector<2x128xf32>
    %15 = arith.addf %12, %14 : vector<2x128xf32>
    %cst_11 = arith.constant 0.00999999977 : f32
    %16 = vector.broadcast %cst_11 : f32 to vector<2x128xf32>
    %17 = arith.mulf %16, %15 : vector<2x128xf32>
    %18 = arith.maximumf %15, %17 : vector<2x128xf32>
    %19 = arith.truncf %18 : vector<2x128xf32> to vector<2x128xbf16>
    %c0_12 = arith.constant 0 : index
    %c0_13 = arith.constant 0 : index
    %20 = vector.load %arg5[%c0_12, %c0_13] : memref<128x128xbf16, #tpu.memory_space<vmem>>, vector<128x128xbf16>
    %cst_14 = arith.constant dense<0.000000e+00> : vector<2x128xf32>
    %21 = tpu.matmul %19, %20, %cst_14 {dimension_numbers = #tpu.dot_dimension_numbers<[1], [0], [0], [1], [0, 0, 1, 1], [], []>} : vector<2x128xbf16>, vector<128x128xbf16>, vector<2x128xf32> -> vector<2x128xf32>
    %c0_15 = arith.constant 0 : index
    %c0_16 = arith.constant 0 : index
    %22 = vector.load %arg6[%c0_15, %c0_16] : memref<1x128xf32, #tpu.memory_space<vmem>>, vector<1x128xf32>
    %23 = vector.broadcast %22 : vector<1x128xf32> to vector<2x128xf32>
    %24 = arith.addf %21, %23 : vector<2x128xf32>
    %25 = vector.extract_strided_slice %24 {offsets = [0, 0], sizes = [2, 4], strides = [1, 1]} : vector<2x128xf32> to vector<2x4xf32>
    %26 = vector.extract_strided_slice %24 {offsets = [0, 4], sizes = [2, 1], strides = [1, 1]} : vector<2x128xf32> to vector<2x1xf32>
    %27 = vector.broadcast %26 : vector<2x1xf32> to vector<2x4xf32>
    %28 = arith.addf %27, %25 : vector<2x4xf32>
    %29 = vector.shape_cast %25 : vector<2x4xf32> to vector<1x2x4xf32>
    %cst_17 = arith.constant dense<0.000000e+00> : vector<1xf32>
    %30 = vector.multi_reduction <add>, %29, %cst_17 [1, 2] : vector<1x2x4xf32> to vector<1xf32>
    %31 = vector.shape_cast %30 : vector<1xf32> to vector<1x1x1xf32>
    %32 = vector.extract %31[0, 0, 0] : f32 from vector<1x1x1xf32>
    %cst_18 = arith.constant 8.000000e+00 : f32
    %33 = arith.divf %32, %cst_18 : f32
    %34 = vector.broadcast %33 : f32 to vector<2x4xf32>
    %35 = arith.subf %28, %34 : vector<2x4xf32>
    %c0_19 = arith.constant 0 : index
    %c0_20 = arith.constant 0 : index
    %36 = vector.load %arg7[%c0_19, %c0_20] : memref<2x4xf32, #tpu.memory_space<vmem>>, vector<2x4xf32>
    tpu.vector_store %arg7[%c0_19, %c0_20], %35 {strides = array<i32>} : memref<2x4xf32, #tpu.memory_space<vmem>>, vector<2x4xf32>,
    return
  }
}

</mosaic_0001>

<llo_original>
// kernel: dueling_dqn_forward.1
$region0: #{dueling_dqn_forward.1}
  #allocation0 [shape = 'u32[]', space=smem, size = 0x4, offset = 0x4, fixed_abs, tag = 'smem constant byte address 0x4 - core index']
  #allocation1 [shape = 'u32[144,128]{1,0:T(1,128)}', space=vmem, size = 0x12000, scoped, tag = 'internal scratch']
  %s0 = inlined_call_operand.hbm [shape: f32[2,8], index: 0, kind: input, shape index: {}]
  %s1 = inlined_call_operand.hbm [shape: bf16[8,128], index: 1, kind: input, shape index: {}]
  %s2 = inlined_call_operand.vmem [shape: f32[1,128], index: 2, kind: input, shape index: {}]
  %s3 = inlined_call_operand.hbm [shape: bf16[128,128], index: 3, kind: input, shape index: {}]
  %s4 = inlined_call_operand.vmem [shape: f32[1,128], index: 4, kind: input, shape index: {}]
  %s5 = inlined_call_operand.hbm [shape: bf16[128,128], index: 5, kind: input, shape index: {}]
  %s6 = inlined_call_operand.vmem [shape: f32[1,128], index: 6, kind: input, shape index: {}]
  %s7 = inlined_call_operand.hbm [shape: f32[2,4], index: 7, kind: output, shape index: {}]
  %s8 = sld [smem:[#allocation0]]
  $region54: #{dueling_dqn_forward.1} parent=0
    _
  %s10 = ssub.s32 1, %s8
  %s11 = scalar_select 0, %s10, %s8
  $region1: #{dueling_dqn_forward.1} parent=0
    #allocation2 [shape = 'u8[1024]{0}', space=vmem, size = 0x400, scoped, tag = 'input window, operand 0, single buffered']
    #allocation3 [shape = 's32[1]{0}', space=sflag, size = 0x4, scoped, tag = 'scoped memory for dueling_dqn_forward.1']
    #allocation4 [shape = 's32[1]{0}', space=sflag, size = 0x4, scoped, tag = 'scoped memory for dueling_dqn_forward.1']
    #allocation5 [shape = 'u8[2048]{0}', space=vmem, size = 0x800, scoped, tag = 'input window, operand 1, single buffered']
    #allocation6 [shape = 's32[1]{0}', space=sflag, size = 0x4, scoped, tag = 'scoped memory for dueling_dqn_forward.1']
    #allocation7 [shape = 'u8[32768]{0}', space=vmem, size = 0x8000, scoped, tag = 'input window, operand 3, single buffered']
    #allocation8 [shape = 'u8[32768]{0}', space=vmem, size = 0x8000, scoped, tag = 'input window, operand 5, single buffered']
    #allocation9 [shape = 's32[1]{0}', space=sflag, size = 0x4, scoped, tag = 'scoped memory for dueling_dqn_forward.1']
    #allocation10 [shape = 'u8[1024]{0}', space=vmem, size = 0x400, scoped, tag = 'output window, operand 0, single buffered']
    %12 = vsyncpa [#allocation3], 0
    %13 = vsyncpa [#allocation6], 0
    %14 = vsyncpa [#allocation9], 0
    %15 = vsyncpa [#allocation4], 0
    // Predicated region
    $region2: #{dueling_dqn_forward.1} parent=1 // pred_check
      _
    $region3: #{dueling_dqn_forward.1} parent=1 // pred_check_branch
      %17 = sbr.rel (0) target = $region5
    $region4: #{dueling_dqn_forward.1} parent=1 // pred_region
      %s19 = ssub.s32 32, 32
      %20 = vsyncadd [#allocation3], %s19
      %s22 = sshll.u32 [#allocation2], 4
      %s23 = int_to_ptr.vmem [resolvable:$true] %s22
      %25 = dma.hbm_to_vmem [thread:$0]  %s0, 32, %s23, [#allocation3]
    $region5: #{dueling_dqn_forward.1} parent=1 // pred_fallthru
      _
    // Predicated region
    $region6: #{dueling_dqn_forward.1} parent=1 // pred_check
      _
    $region7: #{dueling_dqn_forward.1} parent=1 // pred_check_branch
      %27 = sbr.rel (0) target = $region9
    $region8: #{dueling_dqn_forward.1} parent=1 // pred_region
      %s29 = ssub.s32 64, 64
      %30 = vsyncadd [#allocation6], %s29
      %s32 = sshll.u32 [#allocation5], 4
      %s33 = int_to_ptr.vmem [resolvable:$true] %s32
      %35 = dma.hbm_to_vmem [thread:$0]  %s1, 64, %s33, [#allocation6]
    $region9: #{dueling_dqn_forward.1} parent=1 // pred_fallthru
      _
    // Predicated region
    $region10: #{dueling_dqn_forward.1} parent=1 // pred_check
      _
    $region11: #{dueling_dqn_forward.1} parent=1 // pred_check_branch
      %37 = sbr.rel (0) target = $region13
    $region12: #{dueling_dqn_forward.1} parent=1 // pred_region
      _
    $region13: #{dueling_dqn_forward.1} parent=1 // pred_fallthru
      _
    // Predicated region
    $region14: #{dueling_dqn_forward.1} parent=1 // pred_check
      _
    $region15: #{dueling_dqn_forward.1} parent=1 // pred_check_branch
      %39 = sbr.rel (0) target = $region17
    $region16: #{dueling_dqn_forward.1} parent=1 // pred_region
      %s41 = ssub.s32 1024, 1024
      %42 = vsyncadd [#allocation6], %s41
      %s43 = sshll.u32 [#allocation7], 4
      %s44 = int_to_ptr.vmem [resolvable:$true] %s43
      %49 = dma.hbm_to_vmem [thread:$0]  %s3, 1024, %s44, [#allocation6], 64, 64, 4
    $region17: #{dueling_dqn_forward.1} parent=1 // pred_fallthru
      _
    // Predicated region
    $region18: #{dueling_dqn_forward.1} parent=1 // pred_check
      _
    $region19: #{dueling_dqn_forward.1} parent=1 // pred_check_branch
      %51 = sbr.rel (0) target = $region21
    $region20: #{dueling_dqn_forward.1} parent=1 // pred_region
      _
    $region21: #{dueling_dqn_forward.1} parent=1 // pred_fallthru
      _
    // Predicated region
    $region22: #{dueling_dqn_forward.1} parent=1 // pred_check
      _
    $region23: #{dueling_dqn_forward.1} parent=1 // pred_check_branch
      %53 = sbr.rel (0) target = $region25
    $region24: #{dueling_dqn_forward.1} parent=1 // pred_region
      %s55 = ssub.s32 1024, 1024
      %56 = vsyncadd [#allocation9], %s55
      %s57 = sshll.u32 [#allocation8], 4
      %s58 = int_to_ptr.vmem [resolvable:$true] %s57
      %63 = dma.hbm_to_vmem [thread:$0]  %s5, 1024, %s58, [#allocation9], 64, 64, 4
    $region25: #{dueling_dqn_forward.1} parent=1 // pred_fallthru
      _
    // Predicated region
    $region26: #{dueling_dqn_forward.1} parent=1 // pred_check
      _
    $region27: #{dueling_dqn_forward.1} parent=1 // pred_check_branch
      %65 = sbr.rel (0) target = $region29
    $region28: #{dueling_dqn_forward.1} parent=1 // pred_region
      _
    $region29: #{dueling_dqn_forward.1} parent=1 // pred_fallthru
      _
    // Predicated region
    $region30: #{dueling_dqn_forward.1} parent=1 // pred_check
      _
    $region31: #{dueling_dqn_forward.1} parent=1 // pred_check_branch
      %67 = sbr.rel (0) target = $region33
    $region32: #{dueling_dqn_forward.1} parent=1 // pred_region
      %68 = dma.done [#allocation3], 32
    $region33: #{dueling_dqn_forward.1} parent=1 // pred_fallthru
      _
    // Predicated region
    $region34: #{dueling_dqn_forward.1} parent=1 // pred_check
      _
    $region35: #{dueling_dqn_forward.1} parent=1 // pred_check_branch
      %70 = sbr.rel (0) target = $region37
    $region36: #{dueling_dqn_forward.1} parent=1 // pred_region
      %71 = dma.done [#allocation6], 64
    $region37: #{dueling_dqn_forward.1} parent=1 // pred_fallthru
      _
    // Predicated region
    $region38: #{dueling_dqn_forward.1} parent=1 // pred_check
      _
    $region39: #{dueling_dqn_forward.1} parent=1 // pred_check_branch
      %73 = sbr.rel (0) target = $region41
    $region40: #{dueling_dqn_forward.1} parent=1 // pred_region
      %74 = dma.done [#allocation6], 1024
    $region41: #{dueling_dqn_forward.1} parent=1 // pred_fallthru
      _
    // Predicated region
    $region42: #{dueling_dqn_forward.1} parent=1 // pred_check
      _
    $region43: #{dueling_dqn_forward.1} parent=1 // pred_check_branch
      %76 = sbr.rel (0) target = $region45
    $region44: #{dueling_dqn_forward.1} parent=1 // pred_region
      %77 = dma.done [#allocation9], 1024
    $region45: #{dueling_dqn_forward.1} parent=1 // pred_fallthru
      _
    %v79 = vld [vmem:[#allocation2] sm:$0x3]
    %v80 = vpack.c.bf16 %v79, %v79
    %v81 = vld [vmem:[#allocation5] sm:$0xf]
    %v82 = vld [vmem:[%s2] sm:$0x1]
    %v84 = vlaneseq
    %v85 = vshrl.u32 %v84, 7
    %v86 = vsub.s32 0, %v85
    %v87 = vrot.slane %v82, %v86
    %vm89 = vcmask 64512
    %v91 = vsel %vm89, %v80, 0
    %vm93 = vcmask 1043456
    %v95 = vsel %vm93, %v81, 0
    %97 = vmatprep.subr.bf16.mxu0 0
    %98 = vmatpush1.bf16.msra.mxu0 %v95
    %99 = vmatprep.subr.bf16.mxu0 0
    %100 = vmatpush1.bf16.msra.mxu0 0
    %101 = vmatprep.subr.bf16.mxu0 0
    %102 = vmatpush1.bf16.msra.mxu0 0
    %103 = vmatprep.subr.bf16.mxu0 0
    %104 = vmatpush1.bf16.msra.mxu0 0
    %105 = vmatprep.subr.bf16.mxu0 0
    %106 = vmatpush1.bf16.msra.mxu0 0
    %107 = vmatprep.subr.bf16.mxu0 0
    %108 = vmatpush1.bf16.msra.mxu0 0
    %109 = vmatprep.subr.bf16.mxu0 0
    %110 = vmatpush1.bf16.msra.mxu0 0
    %111 = vmatprep.subr.bf16.mxu0 0
    %112 = vmatpush1.bf16.msra.mxu0 0
    %113 = vmatprep.subr.bf16.mxu0 0
    %114 = vmatpush1.bf16.msra.mxu0 0
    %115 = vmatprep.subr.bf16.mxu0 0
    %116 = vmatpush1.bf16.msra.mxu0 0
    %117 = vmatprep.subr.bf16.mxu0 0
    %118 = vmatpush1.bf16.msra.mxu0 0
    %119 = vmatprep.subr.bf16.mxu0 0
    %120 = vmatpush1.bf16.msra.mxu0 0
    %121 = vmatprep.subr.bf16.mxu0 0
    %122 = vmatpush1.bf16.msra.mxu0 0
    %123 = vmatprep.subr.bf16.mxu0 0
    %124 = vmatpush1.bf16.msra.mxu0 0
    %125 = vmatprep.subr.bf16.mxu0 0
    %126 = vmatpush1.bf16.msra.mxu0 0
    %127 = vmatprep.subr.bf16.mxu0 0
    %128 = vmatpush1.bf16.msra.mxu0 0
    %129 = vmatprep.mubr.bf16.mxu0 0
    %130 = vmatmul.mubr.bf16.gmra.mrb[0].mxu0 %v91
    %v131 = vpop.f32.mrb[0].mxu0
    %v132 = vadd.f32 %v87, %v131
    %v133 = vpop.f32.mrb[0].mxu0
    %v134 = vpop.f32.mrb[0].mxu0
    %v135 = vpop.f32.mrb[0].mxu0
    %136 = vdwg.mxu0
    %v137 = vmul.f32 %v132, 0.01
    %v138 = vmax.f32 %v132, %v137
    %v139 = vpack.c.bf16 %v138, %v138
    %v140 = vld [vmem:[#allocation7] sm:$0xf]
    %v141 = vld [vmem:[#allocation7 + $0x4] sm:$0xf]
    %v142 = vld [vmem:[#allocation7 + $0x8] sm:$0xf]
    %v143 = vld [vmem:[#allocation7 + $0xc] sm:$0xf]
    %v144 = vld [vmem:[#allocation7 + $0x10] sm:$0xf]
    %v145 = vld [vmem:[#allocation7 + $0x14] sm:$0xf]
    %v146 = vld [vmem:[#allocation7 + $0x18] sm:$0xf]
    %v147 = vld [vmem:[#allocation7 + $0x1c] sm:$0xf]
    %v148 = vld [vmem:[#allocation7 + $0x20] sm:$0xf]
    %v149 = vld [vmem:[#allocation7 + $0x24] sm:$0xf]
    %v150 = vld [vmem:[#allocation7 + $0x28] sm:$0xf]
    %v151 = vld [vmem:[#allocation7 + $0x2c] sm:$0xf]
    %v152 = vld [vmem:[#allocation7 + $0x30] sm:$0xf]
    %v153 = vld [vmem:[#allocation7 + $0x34] sm:$0xf]
    %v154 = vld [vmem:[#allocation7 + $0x38] sm:$0xf]
    %v155 = vld [vmem:[#allocation7 + $0x3c] sm:$0xf]
    %v156 = vld [vmem:[%s4] sm:$0x1]
    %v158 = vlaneseq
    %v159 = vshrl.u32 %v158, 7
    %v160 = vsub.s32 0, %v159
    %v161 = vrot.slane %v156, %v160
    %v179 = vunpack.c.l.b16 %v140
    %v180 = vunpack.c.l.b16 %v141
    %v181 = vunpack.c.l.b16 %v142
    %v182 = vunpack.c.l.b16 %v143
    %v183 = vunpack.c.l.b16 %v144
    %v184 = vunpack.c.l.b16 %v145
    %v185 = vunpack.c.l.b16 %v146
    %v186 = vunpack.c.l.b16 %v147
    %v187 = vunpack.c.l.b16 %v148
    %v188 = vunpack.c.l.b16 %v149
    %v189 = vunpack.c.l.b16 %v150
    %v190 = vunpack.c.l.b16 %v151
    %v191 = vunpack.c.l.b16 %v152
    %v192 = vunpack.c.l.b16 %v153
    %v193 = vunpack.c.l.b16 %v154
    %v194 = vunpack.c.l.b16 %v155
    %v195 = vpack.c.b16 %v180, %v179
    %v196 = vpack.c.b16 %v182, %v181
    %v197 = vpack.c.b16 %v184, %v183
    %v198 = vpack.c.b16 %v186, %v185
    %v199 = vpack.c.b16 %v188, %v187
    %v200 = vpack.c.b16 %v190, %v189
    %v201 = vpack.c.b16 %v192, %v191
    %v202 = vpack.c.b16 %v194, %v193
    %211 = vmatprep.subr.bf16.mxu0 0
    %212 = vmatpush1.bf16.msra.mxu0 %v195
    %213 = vmatprep.subr.bf16.mxu0 0
    %214 = vmatpush1.bf16.msra.mxu0 %v196
    %215 = vmatprep.subr.bf16.mxu0 0
    %216 = vmatpush1.bf16.msra.mxu0 %v197
    %217 = vmatprep.subr.bf16.mxu0 0
    %218 = vmatpush1.bf16.msra.mxu0 %v198
    %219 = vmatprep.subr.bf16.mxu0 0
    %220 = vmatpush1.bf16.msra.mxu0 %v199
    %221 = vmatprep.subr.bf16.mxu0 0
    %222 = vmatpush1.bf16.msra.mxu0 %v200
    %223 = vmatprep.subr.bf16.mxu0 0
    %224 = vmatpush1.bf16.msra.mxu0 %v201
    %225 = vmatprep.subr.bf16.mxu0 0
    %226 = vmatpush1.bf16.msra.mxu0 %v202
    %227 = vmatprep.subr.bf16.mxu0 0
    %228 = vmatpush1.bf16.msra.mxu0 0
    %229 = vmatprep.subr.bf16.mxu0 0
    %230 = vmatpush1.bf16.msra.mxu0 0
    %231 = vmatprep.subr.bf16.mxu0 0
    %232 = vmatpush1.bf16.msra.mxu0 0
    %233 = vmatprep.subr.bf16.mxu0 0
    %234 = vmatpush1.bf16.msra.mxu0 0
    %235 = vmatprep.subr.bf16.mxu0 0
    %236 = vmatpush1.bf16.msra.mxu0 0
    %237 = vmatprep.subr.bf16.mxu0 0
    %238 = vmatpush1.bf16.msra.mxu0 0
    %239 = vmatprep.subr.bf16.mxu0 0
    %240 = vmatpush1.bf16.msra.mxu0 0
    %241 = vmatprep.subr.bf16.mxu0 0
    %242 = vmatpush1.bf16.msra.mxu0 0
    %243 = vmatprep.mubr.bf16.mxu0 0
    %244 = vmatmul.mubr.bf16.gmra.mrb[0].mxu0 %v139
    %v245 = vpop.f32.mrb[0].mxu0
    %v246 = vadd.f32 %v161, %v245
    %v247 = vpop.f32.mrb[0].mxu0
    %v248 = vpop.f32.mrb[0].mxu0
    %v249 = vpop.f32.mrb[0].mxu0
    %250 = vdwg.mxu0
    %v251 = vmul.f32 %v246, 0.01
    %v252 = vmax.f32 %v246, %v251
    %v253 = vpack.c.bf16 %v252, %v252
    %v254 = vld [vmem:[#allocation8] sm:$0xf]
    %v255 = vld [vmem:[#allocation8 + $0x4] sm:$0xf]
    %v256 = vld [vmem:[#allocation8 + $0x8] sm:$0xf]
    %v257 = vld [vmem:[#allocation8 + $0xc] sm:$0xf]
    %v258 = vld [vmem:[#allocation8 + $0x10] sm:$0xf]
    %v259 = vld [vmem:[#allocation8 + $0x14] sm:$0xf]
    %v260 = vld [vmem:[#allocation8 + $0x18] sm:$0xf]
    %v261 = vld [vmem:[#allocation8 + $0x1c] sm:$0xf]
    %v262 = vld [vmem:[#allocation8 + $0x20] sm:$0xf]
    %v263 = vld [vmem:[#allocation8 + $0x24] sm:$0xf]
    %v264 = vld [vmem:[#allocation8 + $0x28] sm:$0xf]
    %v265 = vld [vmem:[#allocation8 + $0x2c] sm:$0xf]
    %v266 = vld [vmem:[#allocation8 + $0x30] sm:$0xf]
    %v267 = vld [vmem:[#allocation8 + $0x34] sm:$0xf]
    %v268 = vld [vmem:[#allocation8 + $0x38] sm:$0xf]
    %v269 = vld [vmem:[#allocation8 + $0x3c] sm:$0xf]
    %v270 = vld [vmem:[%s6] sm:$0x1]
    %v272 = vlaneseq
    %v273 = vshrl.u32 %v272, 7
    %v274 = vsub.s32 0, %v273
    %v275 = vrot.slane %v270, %v274
    %v293 = vunpack.c.l.b16 %v254
    %v294 = vunpack.c.l.b16 %v255
    %v295 = vunpack.c.l.b16 %v256
    %v296 = vunpack.c.l.b16 %v257
    %v297 = vunpack.c.l.b16 %v258
    %v298 = vunpack.c.l.b16 %v259
    %v299 = vunpack.c.l.b16 %v260
    %v300 = vunpack.c.l.b16 %v261
    %v301 = vunpack.c.l.b16 %v262
    %v302 = vunpack.c.l.b16 %v263
    %v303 = vunpack.c.l.b16 %v264
    %v304 = vunpack.c.l.b16 %v265
    %v305 = vunpack.c.l.b16 %v266
    %v306 = vunpack.c.l.b16 %v267
    %v307 = vunpack.c.l.b16 %v268
    %v308 = vunpack.c.l.b16 %v269
    %v309 = vpack.c.b16 %v294, %v293
    %v310 = vpack.c.b16 %v296, %v295
    %v311 = vpack.c.b16 %v298, %v297
    %v312 = vpack.c.b16 %v300, %v299
    %v313 = vpack.c.b16 %v302, %v301
    %v314 = vpack.c.b16 %v304, %v303
    %v315 = vpack.c.b16 %v306, %v305
    %v316 = vpack.c.b16 %v308, %v307
    %325 = vmatprep.subr.bf16.mxu0 0
    %326 = vmatpush1.bf16.msra.mxu0 %v309
    %327 = vmatprep.subr.bf16.mxu0 0
    %328 = vmatpush1.bf16.msra.mxu0 %v310
    %329 = vmatprep.subr.bf16.mxu0 0
    %330 = vmatpush1.bf16.msra.mxu0 %v311
    %331 = vmatprep.subr.bf16.mxu0 0
    %332 = vmatpush1.bf16.msra.mxu0 %v312
    %333 = vmatprep.subr.bf16.mxu0 0
    %334 = vmatpush1.bf16.msra.mxu0 %v313
    %335 = vmatprep.subr.bf16.mxu0 0
    %336 = vmatpush1.bf16.msra.mxu0 %v314
    %337 = vmatprep.subr.bf16.mxu0 0
    %338 = vmatpush1.bf16.msra.mxu0 %v315
    %339 = vmatprep.subr.bf16.mxu0 0
    %340 = vmatpush1.bf16.msra.mxu0 %v316
    %341 = vmatprep.subr.bf16.mxu0 0
    %342 = vmatpush1.bf16.msra.mxu0 0
    %343 = vmatprep.subr.bf16.mxu0 0
    %344 = vmatpush1.bf16.msra.mxu0 0
    %345 = vmatprep.subr.bf16.mxu0 0
    %346 = vmatpush1.bf16.msra.mxu0 0
    %347 = vmatprep.subr.bf16.mxu0 0
    %348 = vmatpush1.bf16.msra.mxu0 0
    %349 = vmatprep.subr.bf16.mxu0 0
    %350 = vmatpush1.bf16.msra.mxu0 0
    %351 = vmatprep.subr.bf16.mxu0 0
    %352 = vmatpush1.bf16.msra.mxu0 0
    %353 = vmatprep.subr.bf16.mxu0 0
    %354 = vmatpush1.bf16.msra.mxu0 0
    %355 = vmatprep.subr.bf16.mxu0 0
    %356 = vmatpush1.bf16.msra.mxu0 0
    %357 = vmatprep.mubr.bf16.mxu0 0
    %358 = vmatmul.mubr.bf16.gmra.mrb[0].mxu0 %v253
    %v359 = vpop.f32.mrb[0].mxu0
    %v360 = vadd.f32 %v275, %v359
    %v361 = vpop.f32.mrb[0].mxu0
    %v362 = vpop.f32.mrb[0].mxu0
    %v363 = vpop.f32.mrb[0].mxu0
    %364 = vdwg.mxu0
    %366 = vset.pattern.permute.xlu0 4
    %367 = vperm.xlu0 %366, %v360
    %v368 = vpop.permute.xlu0 %367
    %v370 = vadd.f32 %v368, %v360
    %vm371 = vcmask 25600
    %v372 = vsel %vm371, %v360, 0.0
    %373 = vadd.xlane.f32.xlu0 %v372
    %v374 = vpop.xlane.xlu0 %373
    %v375 = vrot.slane %v374, 4
    %v376 = vadd.f32 %v374, %v375
    %v377 = vrot.slane %v376, 2
    %v378 = vadd.f32 %v376, %v377
    %v379 = vrot.slane %v378, 1
    %v380 = vadd.f32 %v378, %v379
    %s381 = vtos %v380
    %v382 = vrcp.pop 8.0
    %s383 = vtos %v382
    %s384 = smul.f32 %s381, %s383
    %v385 = vstv %s384
    %v386 = vsub.f32 %v370, %v385
    %387 = vst.msk [vmem:[#allocation10] sm:$0x3] %vm371, %v386
    // Predicated region
    $region46: #{dueling_dqn_forward.1} parent=1 // pred_check
      _
    $region47: #{dueling_dqn_forward.1} parent=1 // pred_check_branch
      %389 = sbr.rel (0) target = $region49
    $region48: #{dueling_dqn_forward.1} parent=1 // pred_region
      %s391 = ssub.s32 32, 32
      %392 = vsyncadd [#allocation4], %s391
      %s394 = sshll.u32 [#allocation10], 4
      %s395 = int_to_ptr.vmem [resolvable:$true] %s394
      %397 = dma.vmem_to_hbm [thread:$0]  %s395, 32, %s7, [#allocation4]
    $region49: #{dueling_dqn_forward.1} parent=1 // pred_fallthru
      _
    // Predicated region
    $region50: #{dueling_dqn_forward.1} parent=1 // pred_check
      _
    $region51: #{dueling_dqn_forward.1} parent=1 // pred_check_branch
      %399 = sbr.rel (0) target = $region53
    $region52: #{dueling_dqn_forward.1} parent=1 // pred_region
      %400 = dma.done [#allocation4], 32
    $region53: #{dueling_dqn_forward.1} parent=1 // pred_fallthru
      _
    %401 = vsyncpa [#allocation3], 1
    %402 = vsyncpa [#allocation6], 1
    %403 = vsyncpa [#allocation9], 1
    %404 = vsyncpa [#allocation4], 1

</llo_original>
